<compile_context>
chip_gen: v6e
topology: v6e:2x2x1
jax: 0.10.0
libtpu: 0.0.40
codegen_flags: <defaults>
</compile_context>

<pallas_src>
import math

import jax
import jax.numpy as jnp
from jax.experimental import pallas as pl
from jax.experimental.pallas import tpu as pltpu


def _vit_mlp_kernel(x_ref, w1_ref, b1_ref, w2_ref, b2_ref, o_ref):
    # x_ref: (TM, D_in) bf16, w1_ref: (D_in, H) bf16, b1_ref: (1, H) f32,
    # w2_ref: (H, D_out) bf16, b2_ref: (1, D_out) f32, o_ref: (TM, D_out) f32
    # dense1 (bf16 operands, f32 accumulation on the MXU)
    h = jnp.dot(x_ref[...], w1_ref[...], preferred_element_type=jnp.float32)
    h = h + b1_ref[...]

    # GELU (exact / erf form, matching torch.nn.GELU() default), in f32
    h = 0.5 * h * (1.0 + jax.lax.erf(h * (1.0 / math.sqrt(2.0))))

    # dropout1: identity (eval mode)

    # dense2 (cast the activation to bf16 for the MXU, accumulate in f32)
    out = jnp.dot(h.astype(w2_ref.dtype), w2_ref[...],
                  preferred_element_type=jnp.float32)
    out = out + b2_ref[...]

    # dropout2: identity (eval mode)
    o_ref[...] = out.astype(o_ref.dtype)


def vit_mlp(x, w1, b1, w2, b2, *, block_m=256, compute_dtype=jnp.bfloat16):
    """x: (B, S, D_in). Returns (B, S, D_out) in x.dtype.

    block_m: token-tile size. 256 is a good default for v6e/v7x; the wrapper clamps
    it to M for small inputs. Keep it a multiple of 8 (f32) / 16 (bf16) for real use.
    """
    B, S, D_in = x.shape
    H = w1.shape[1]
    D_out = w2.shape[1]
    M = B * S

    tm = min(block_m, M)
    grid_m = pl.cdiv(M, tm)

    # Cast matmul operands once in the wrapper (halves x DMA bytes and weight VMEM).
    x2d = x.reshape(M, D_in).astype(compute_dtype)
    w1c = w1.astype(compute_dtype)
    w2c = w2.astype(compute_dtype)
    b1_2d = b1.reshape(1, H).astype(jnp.float32)
    b2_2d = b2.reshape(1, D_out).astype(jnp.float32)

    out_dtype = x.dtype
    cbytes = jnp.dtype(compute_dtype).itemsize
    obytes = jnp.dtype(out_dtype).itemsize

    # VMEM budget: resident weights/biases + double-buffered x/out tiles + (TM,H) f32
    # intermediate, with ~1.5x headroom; floor 32 MiB, cap 64 MiB (v7x physical VMEM).
    weight_bytes = (D_in * H + H * D_out) * cbytes + (H + D_out) * 4
    tile_bytes = 2 * tm * D_in * cbytes + 2 * tm * D_out * obytes + tm * H * 4
    vmem_limit = int(min(max(1.5 * (weight_bytes + tile_bytes), 32 * 1024 * 1024),
                         64 * 1024 * 1024))

    cost = pl.CostEstimate(
        flops=2 * M * (D_in * H + H * D_out),
        transcendentals=M * H,
        bytes_accessed=(M * D_in * cbytes + weight_bytes + M * D_out * obytes),
    )

    out2d = pl.pallas_call(
        _vit_mlp_kernel,
        out_shape=jax.ShapeDtypeStruct((M, D_out), out_dtype),
        grid_spec=pltpu.PrefetchScalarGridSpec(
            num_scalar_prefetch=0,
            grid=(grid_m,),
            in_specs=[
                pl.BlockSpec((tm, D_in), lambda i: (i, 0)),    # streamed token tile
                pl.BlockSpec((D_in, H), lambda i: (0, 0)),     # resident weights
                pl.BlockSpec((1, H), lambda i: (0, 0)),        # resident bias
                pl.BlockSpec((H, D_out), lambda i: (0, 0)),    # resident weights
                pl.BlockSpec((1, D_out), lambda i: (0, 0)),    # resident bias
            ],
            out_specs=pl.BlockSpec((tm, D_out), lambda i: (i, 0)),
        ),
        compiler_params=pltpu.CompilerParams(
            # Token tiles are independent -> "parallel" lets v7x shard across both TCs.
            dimension_semantics=("parallel",),
            vmem_limit_bytes=vmem_limit,
        ),
        cost_estimate=cost,
    )(x2d, w1c, b1_2d, w2c, b2_2d)

    return out2d.reshape(B, S, D_out)


def init_params(key, d_in, mlp_num_hiddens, mlp_num_outputs):
    """Deterministic init mimicking nn.Linear's kaiming-uniform-style bounds."""
    k1, k2, k3, k4 = jax.random.split(key, 4)
    bound1 = 1.0 / math.sqrt(d_in)
    bound2 = 1.0 / math.sqrt(mlp_num_hiddens)
    # Stored as (in, out): transpose of PyTorch's (out, in) weight layout.
    w1 = jax.random.uniform(k1, (d_in, mlp_num_hiddens), jnp.float32, -bound1, bound1)
    b1 = jax.random.uniform(k2, (mlp_num_hiddens,), jnp.float32, -bound1, bound1)
    w2 = jax.random.uniform(k3, (mlp_num_hiddens, mlp_num_outputs), jnp.float32, -bound2, bound2)
    b2 = jax.random.uniform(k4, (mlp_num_outputs,), jnp.float32, -bound2, bound2)
    return w1, b1, w2, b2


def _reference(x, w1, b1, w2, b2, compute_dtype=jnp.bfloat16):
    """Plain-JAX reference with the same bf16-operand / f32-accum semantics."""
    B, S, D_in = x.shape
    x2d = x.reshape(-1, D_in).astype(compute_dtype)
    h = jnp.dot(x2d, w1.astype(compute_dtype),
                preferred_element_type=jnp.float32) + b1[None, :]
    h = 0.5 * h * (1.0 + jax.lax.erf(h / math.sqrt(2.0)))
    out = jnp.dot(h.astype(compute_dtype), w2.astype(compute_dtype),
                  preferred_element_type=jnp.float32) + b2[None, :]
    return out.reshape(B, S, w2.shape[1]).astype(x.dtype)


if __name__ == "__main__":
    key = jax.random.PRNGKey(0)

    # --- Small ViT-style shapes (matches the module's toy config) ---------------
    B, S, D_IN = 2, 8, 32
    MLP_NUM_HIDDENS, MLP_NUM_OUTPUTS = 64, 32

    kx, kp, kx2, kp2 = jax.random.split(key, 4)
    x = jax.random.normal(kx, (B, S, D_IN), dtype=jnp.float32)
    w1, b1, w2, b2 = init_params(kp, D_IN, MLP_NUM_HIDDENS, MLP_NUM_OUTPUTS)

    out = vit_mlp(x, w1, b1, w2, b2)
    out = jax.block_until_ready(out)
    ref = _reference(x, w1, b1, w2, b2)
    assert out.shape == (B, S, MLP_NUM_OUTPUTS)
    assert jnp.allclose(out, ref, atol=2e-2, rtol=2e-2), "small-shape mismatch"

    # --- Second check: lane-dense dims + multi-tile grid (exercises the pipeline) -
    B2, S2, D_IN2 = 4, 128, 128
    H2, D_OUT2 = 256, 128
    x2 = jax.random.normal(kx2, (B2, S2, D_IN2), dtype=jnp.float32)
    w1b, b1b, w2b, b2b = init_params(kp2, D_IN2, H2, D_OUT2)

    out2 = vit_mlp(x2, w1b, b1b, w2b, b2b, block_m=128)   # M=512 -> grid=(4,)
    out2 = jax.block_until_ready(out2)
    ref2 = _reference(x2, w1b, b1b, w2b, b2b)
    assert out2.shape == (B2, S2, D_OUT2)
    assert jnp.allclose(out2, ref2, atol=2e-2, rtol=2e-2), "tiled-shape mismatch"

    print("KERNEL_OK")
</pallas_src>

<mosaic_0001>
module attributes {stable_mosaic.version = 11 : i64} {
  func.func @_vit_mlp_kernel(%arg0: i32, %arg1: memref<16x32xbf16, #tpu.memory_space<vmem>>, %arg2: memref<32x64xbf16, #tpu.memory_space<vmem>>, %arg3: memref<1x64xf32, #tpu.memory_space<vmem>>, %arg4: memref<64x32xbf16, #tpu.memory_space<vmem>>, %arg5: memref<1x32xf32, #tpu.memory_space<vmem>>, %arg6: memref<16x32xf32, #tpu.memory_space<vmem>>) attributes {dimension_semantics = [#tpu.dimension_semantics<parallel>], iteration_bounds = array<i64: 1>, scalar_prefetch = 0 : i64, scratch_operands = 0 : i64, tpu.core_type = #tpu.core_type<tc>, window_params = [{transform_indices = @transform_0, window_bounds = array<i64: 16, 32>}, {pipeline_mode = #tpu.pipeline_mode<synchronous>, transform_indices = @transform_1, window_bounds = array<i64: 32, 64>}, {pipeline_mode = #tpu.pipeline_mode<synchronous>, transform_indices = @transform_2, window_bounds = array<i64: 1, 64>}, {pipeline_mode = #tpu.pipeline_mode<synchronous>, transform_indices = @transform_3, window_bounds = array<i64: 64, 32>}, {pipeline_mode = #tpu.pipeline_mode<synchronous>, transform_indices = @transform_4, window_bounds = array<i64: 1, 32>}, {transform_indices = @transform_5, window_bounds = array<i64: 16, 32>}]} {
    %c0 = arith.constant 0 : index
    %c0_0 = arith.constant 0 : index
    %0 = vector.load %arg1[%c0, %c0_0] : memref<16x32xbf16, #tpu.memory_space<vmem>>, vector<16x32xbf16>
    %c0_1 = arith.constant 0 : index
    %c0_2 = arith.constant 0 : index
    %1 = vector.load %arg2[%c0_1, %c0_2] : memref<32x64xbf16, #tpu.memory_space<vmem>>, vector<32x64xbf16>
    %cst = arith.constant dense<0.000000e+00> : vector<16x64xf32>
    %2 = tpu.matmul %0, %1, %cst {dimension_numbers = #tpu.dot_dimension_numbers<[1], [0], [0], [1], [0, 0, 1, 1], [], []>} : vector<16x32xbf16>, vector<32x64xbf16>, vector<16x64xf32> -> vector<16x64xf32>
    %c0_3 = arith.constant 0 : index
    %c0_4 = arith.constant 0 : index
    %3 = vector.load %arg3[%c0_3, %c0_4] : memref<1x64xf32, #tpu.memory_space<vmem>>, vector<1x64xf32>
    %4 = vector.broadcast %3 : vector<1x64xf32> to vector<16x64xf32>
    %5 = arith.addf %2, %4 : vector<16x64xf32>
    %cst_5 = arith.constant 5.000000e-01 : f32
    %6 = vector.broadcast %cst_5 : f32 to vector<16x64xf32>
    %7 = arith.mulf %6, %5 : vector<16x64xf32>
    %cst_6 = arith.constant 0.707106769 : f32
    %8 = vector.broadcast %cst_6 : f32 to vector<16x64xf32>
    %9 = arith.mulf %5, %8 : vector<16x64xf32>
    %10 = math.erf %9 : vector<16x64xf32>
    %cst_7 = arith.constant 1.000000e+00 : f32
    %11 = vector.broadcast %cst_7 : f32 to vector<16x64xf32>
    %12 = arith.addf %11, %10 : vector<16x64xf32>
    %13 = arith.mulf %7, %12 : vector<16x64xf32>
    %14 = arith.truncf %13 : vector<16x64xf32> to vector<16x64xbf16>
    %c0_8 = arith.constant 0 : index
    %c0_9 = arith.constant 0 : index
    %15 = vector.load %arg4[%c0_8, %c0_9] : memref<64x32xbf16, #tpu.memory_space<vmem>>, vector<64x32xbf16>
    %cst_10 = arith.constant dense<0.000000e+00> : vector<16x32xf32>
    %16 = tpu.matmul %14, %15, %cst_10 {dimension_numbers = #tpu.dot_dimension_numbers<[1], [0], [0], [1], [0, 0, 1, 1], [], []>} : vector<16x64xbf16>, vector<64x32xbf16>, vector<16x32xf32> -> vector<16x32xf32>
    %c0_11 = arith.constant 0 : index
    %c0_12 = arith.constant 0 : index
    %17 = vector.load %arg5[%c0_11, %c0_12] : memref<1x32xf32, #tpu.memory_space<vmem>>, vector<1x32xf32>
    %18 = vector.broadcast %17 : vector<1x32xf32> to vector<16x32xf32>
    %19 = arith.addf %16, %18 : vector<16x32xf32>
    %c0_13 = arith.constant 0 : index
    %c0_14 = arith.constant 0 : index
    %20 = vector.load %arg6[%c0_13, %c0_14] : memref<16x32xf32, #tpu.memory_space<vmem>>, vector<16x32xf32>
    tpu.vector_store %arg6[%c0_13, %c0_14], %19 {strides = array<i32>} : memref<16x32xf32, #tpu.memory_space<vmem>>, vector<16x32xf32>,
    return
  }
  func.func @transform_0(%arg0: i32) -> (i32, i32) {
    %c0_i32 = arith.constant 0 : i32
    %c0_i32_0 = arith.constant 0 : i32
    return %arg0, %c0_i32 : i32, i32
  }
  func.func @transform_1(%arg0: i32) -> (i32, i32) {
    %c0_i32 = arith.constant 0 : i32
    %c0_i32_0 = arith.constant 0 : i32
    %c0_i32_1 = arith.constant 0 : i32
    return %c0_i32, %c0_i32_0 : i32, i32
  }
  func.func @transform_2(%arg0: i32) -> (i32, i32) {
    %c0_i32 = arith.constant 0 : i32
    %c0_i32_0 = arith.constant 0 : i32
    %c0_i32_1 = arith.constant 0 : i32
    return %c0_i32, %c0_i32_0 : i32, i32
  }
  func.func @transform_3(%arg0: i32) -> (i32, i32) {
    %c0_i32 = arith.constant 0 : i32
    %c0_i32_0 = arith.constant 0 : i32
    %c0_i32_1 = arith.constant 0 : i32
    return %c0_i32, %c0_i32_0 : i32, i32
  }
  func.func @transform_4(%arg0: i32) -> (i32, i32) {
    %c0_i32 = arith.constant 0 : i32
    %c0_i32_0 = arith.constant 0 : i32
    %c0_i32_1 = arith.constant 0 : i32
    return %c0_i32, %c0_i32_0 : i32, i32
  }
  func.func @transform_5(%arg0: i32) -> (i32, i32) {
    %c0_i32 = arith.constant 0 : i32
    %c0_i32_0 = arith.constant 0 : i32
    return %arg0, %c0_i32 : i32, i32
  }
}

</mosaic_0001>

<llo_original>
// kernel: tpu_custom_call.1
$region0: #{tpu_custom_call.1}
  #allocation0 [shape = 'u32[]', space=smem, size = 0x4, offset = 0x4, fixed_abs, tag = 'smem constant byte address 0x4 - core index']
  #allocation1 [shape = 'u32[144,128]{1,0:T(1,128)}', space=vmem, size = 0x12000, scoped, tag = 'internal scratch']
  %s0 = inlined_call_operand.vmem [shape: bf16[16,32], index: 0, kind: input, shape index: {}]
  %s1 = inlined_call_operand.vmem [shape: bf16[32,64], index: 1, kind: input, shape index: {}]
  %s2 = inlined_call_operand.vmem [shape: f32[1,64], index: 2, kind: input, shape index: {}]
  %s3 = inlined_call_operand.vmem [shape: bf16[64,32], index: 3, kind: input, shape index: {}]
  %s4 = inlined_call_operand.vmem [shape: f32[1,32], index: 4, kind: input, shape index: {}]
  %s5 = inlined_call_operand.hbm [shape: f32[16,32], index: 5, kind: output, shape index: {}]
  %s6 = sld [smem:[#allocation0]]
  $region30: #{tpu_custom_call.1} parent=0
    _
  %s8 = ssub.s32 1, %s6
  %s9 = scalar_select 0, %s8, %s6
  $region1: #{tpu_custom_call.1} parent=0
    #allocation2 [shape = 'u8[8192]{0}', space=vmem, size = 0x2000, scoped, tag = 'output window, operand 0, single buffered']
    #allocation3 [shape = 's32[1]{0}', space=sflag, size = 0x4, scoped, tag = 'scoped memory for tpu_custom_call.1']
    %10 = vsyncpa [#allocation3], 0
    // Predicated region
    $region2: #{tpu_custom_call.1} parent=1 // pred_check
      _
    $region3: #{tpu_custom_call.1} parent=1 // pred_check_branch
      %12 = sbr.rel (0) target = $region5
    $region4: #{tpu_custom_call.1} parent=1 // pred_region
      _
    $region5: #{tpu_custom_call.1} parent=1 // pred_fallthru
      _
    // Predicated region
    $region6: #{tpu_custom_call.1} parent=1 // pred_check
      _
    $region7: #{tpu_custom_call.1} parent=1 // pred_check_branch
      %14 = sbr.rel (0) target = $region9
    $region8: #{tpu_custom_call.1} parent=1 // pred_region
      _
    $region9: #{tpu_custom_call.1} parent=1 // pred_fallthru
      _
    // Predicated region
    $region10: #{tpu_custom_call.1} parent=1 // pred_check
      _
    $region11: #{tpu_custom_call.1} parent=1 // pred_check_branch
      %16 = sbr.rel (0) target = $region13
    $region12: #{tpu_custom_call.1} parent=1 // pred_region
      _
    $region13: #{tpu_custom_call.1} parent=1 // pred_fallthru
      _
    // Predicated region
    $region14: #{tpu_custom_call.1} parent=1 // pred_check
      _
    $region15: #{tpu_custom_call.1} parent=1 // pred_check_branch
      %18 = sbr.rel (0) target = $region17
    $region16: #{tpu_custom_call.1} parent=1 // pred_region
      _
    $region17: #{tpu_custom_call.1} parent=1 // pred_fallthru
      _
    // Predicated region
    $region18: #{tpu_custom_call.1} parent=1 // pred_check
      _
    $region19: #{tpu_custom_call.1} parent=1 // pred_check_branch
      %20 = sbr.rel (0) target = $region21
    $region20: #{tpu_custom_call.1} parent=1 // pred_region
      _
    $region21: #{tpu_custom_call.1} parent=1 // pred_fallthru
      _
    %v22 = vld [vmem:[%s0] sm:$0xf]
    %v23 = vld [vmem:[%s0 + $0x4] sm:$0xf]
    %v24 = vld [vmem:[%s1] sm:$0xf]
    %v25 = vld [vmem:[%s1 + $0x4] sm:$0xf]
    %v26 = vld [vmem:[%s1 + $0x8] sm:$0xf]
    %v27 = vld [vmem:[%s1 + $0xc] sm:$0xf]
    %v28 = vld [vmem:[%s2] sm:$0x1]
    %v30 = vlaneseq
    %v31 = vshrl.u32 %v30, 7
    %v32 = vsub.s32 0, %v31
    %v33 = vrot.slane %v28, %v32
    %v37 = vunpack.c.l.b16 %v22
    %v38 = vunpack.c.l.b16 %v23
    %v39 = vpack.c.b16 %v38, %v37
    %v44 = vunpack.c.l.b16 %v24
    %v45 = vunpack.c.l.b16 %v25
    %v46 = vunpack.c.l.b16 %v26
    %v47 = vunpack.c.l.b16 %v27
    %v48 = vpack.c.b16 %v45, %v44
    %v49 = vpack.c.b16 %v47, %v46
    %vm52 = vcmask 261120
    %v54 = vsel %vm52, %v39, 0
    %56 = vmatprep.subr.bf16.mxu0 0
    %57 = vmatpush1.bf16.msra.mxu0 0
    %58 = vmatprep.subr.bf16.mxu0 0
    %59 = vmatpush1.bf16.msra.mxu0 0
    %60 = vmatprep.subr.bf16.mxu0 0
    %61 = vmatpush1.bf16.msra.mxu0 0
    %62 = vmatprep.subr.bf16.mxu0 0
    %63 = vmatpush1.bf16.msra.mxu0 0
    %64 = vmatprep.subr.bf16.mxu0 0
    %65 = vmatpush1.bf16.msra.mxu0 0
    %66 = vmatprep.subr.bf16.mxu0 0
    %67 = vmatpush1.bf16.msra.mxu0 0
    %68 = vmatprep.subr.bf16.mxu0 0
    %69 = vmatpush1.bf16.msra.mxu0 %v49
    %70 = vmatprep.subr.bf16.mxu0 0
    %71 = vmatpush1.bf16.msra.mxu0 %v48
    %72 = vmatprep.subr.bf16.mxu0 0
    %73 = vmatpush2.bf16.msra.mxu0 0
    %74 = vmatprep.subr.bf16.mxu0 0
    %75 = vmatpush2.bf16.msra.mxu0 0
    %76 = vmatprep.subr.bf16.mxu0 0
    %77 = vmatpush2.bf16.msra.mxu0 0
    %78 = vmatprep.subr.bf16.mxu0 0
    %79 = vmatpush2.bf16.msra.mxu0 0
    %80 = vmatprep.subr.bf16.mxu0 0
    %81 = vmatpush2.bf16.msra.mxu0 0
    %82 = vmatprep.subr.bf16.mxu0 0
    %83 = vmatpush2.bf16.msra.mxu0 0
    %84 = vmatprep.subr.bf16.mxu0 0
    %85 = vmatpush2.bf16.msra.mxu0 0
    %86 = vmatprep.subr.bf16.mxu0 0
    %87 = vmatpush2.bf16.msra.mxu0 0
    %88 = vmatprep.mubr.bf16.mxu0 0
    %89 = vmatmul.mubr.bf16.gmra.mxu0 %v54
    %v90 = vpop.f32.mrf.mxu0
    %v91 = vadd.f32 %v33, %v90
    %v92 = vpop.f32.mrf.mxu0
    %v93 = vpop.f32.mrf.mxu0
    %v94 = vadd.f32 %v33, %v93
    %v95 = vpop.f32.mrf.mxu0
    %96 = vdwg.mxu0
    %v97 = vmul.f32 %v91, 0.5
    %v98 = vmul.f32 %v94, 0.5
    %v99 = vmul.f32 %v91, 0.70710677
    %v100 = vmul.f32 %v94, 0.70710677
    %v101 = verf.f32.pop %v99
    %v102 = verf.f32.pop %v100
    %v103 = vadd.f32 %v101, 1.0
    %v104 = vadd.f32 %v102, 1.0
    %v105 = vmul.f32 %v97, %v103
    %v106 = vmul.f32 %v98, %v104
    %v107 = vpack.c.bf16 %v106, %v105
    %v108 = vld [vmem:[%s3] sm:$0xf]
    %v109 = vld [vmem:[%s3 + $0x4] sm:$0xf]
    %v110 = vld [vmem:[%s3 + $0x8] sm:$0xf]
    %v111 = vld [vmem:[%s3 + $0xc] sm:$0xf]
    %v112 = vld [vmem:[%s3 + $0x10] sm:$0xf]
    %v113 = vld [vmem:[%s3 + $0x14] sm:$0xf]
    %v114 = vld [vmem:[%s3 + $0x18] sm:$0xf]
    %v115 = vld [vmem:[%s3 + $0x1c] sm:$0xf]
    %v116 = vld [vmem:[%s4] sm:$0x1]
    %v118 = vlaneseq
    %v119 = vshrl.u32 %v118, 7
    %v120 = vsub.s32 0, %v119
    %v121 = vrot.slane %v116, %v120
    %v131 = vunpack.c.l.b16 %v108
    %v132 = vunpack.c.l.b16 %v109
    %v133 = vunpack.c.l.b16 %v110
    %v134 = vunpack.c.l.b16 %v111
    %v135 = vunpack.c.l.b16 %v112
    %v136 = vunpack.c.l.b16 %v113
    %v137 = vunpack.c.l.b16 %v114
    %v138 = vunpack.c.l.b16 %v115
    %v139 = vpack.c.b16 %v132, %v131
    %v140 = vpack.c.b16 %v134, %v133
    %v141 = vpack.c.b16 %v136, %v135
    %v142 = vpack.c.b16 %v138, %v137
    %vm147 = vcmask 523264
    %v149 = vsel %vm147, %v107, 0
    %151 = vmatprep.subr.bf16.mxu0 0
    %152 = vmatpush1.bf16.msra.mxu0 0
    %153 = vmatprep.subr.bf16.mxu0 0
    %154 = vmatpush1.bf16.msra.mxu0 0
    %155 = vmatprep.subr.bf16.mxu0 0
    %156 = vmatpush1.bf16.msra.mxu0 0
    %157 = vmatprep.subr.bf16.mxu0 0
    %158 = vmatpush1.bf16.msra.mxu0 0
    %159 = vmatprep.subr.bf16.mxu0 0
    %160 = vmatpush1.bf16.msra.mxu0 %v142
    %161 = vmatprep.subr.bf16.mxu0 0
    %162 = vmatpush1.bf16.msra.mxu0 %v141
    %163 = vmatprep.subr.bf16.mxu0 0
    %164 = vmatpush1.bf16.msra.mxu0 %v140
    %165 = vmatprep.subr.bf16.mxu0 0
    %166 = vmatpush1.bf16.msra.mxu0 %v139
    %167 = vmatprep.subr.bf16.mxu0 0
    %168 = vmatpush2.bf16.msra.mxu0 0
    %169 = vmatprep.subr.bf16.mxu0 0
    %170 = vmatpush2.bf16.msra.mxu0 0
    %171 = vmatprep.subr.bf16.mxu0 0
    %172 = vmatpush2.bf16.msra.mxu0 0
    %173 = vmatprep.subr.bf16.mxu0 0
    %174 = vmatpush2.bf16.msra.mxu0 0
    %175 = vmatprep.subr.bf16.mxu0 0
    %176 = vmatpush2.bf16.msra.mxu0 0
    %177 = vmatprep.subr.bf16.mxu0 0
    %178 = vmatpush2.bf16.msra.mxu0 0
    %179 = vmatprep.subr.bf16.mxu0 0
    %180 = vmatpush2.bf16.msra.mxu0 0
    %181 = vmatprep.subr.bf16.mxu0 0
    %182 = vmatpush2.bf16.msra.mxu0 0
    %183 = vmatprep.mubr.bf16.mxu0 0
    %184 = vmatmul.mubr.bf16.gmra.mxu0 %v149
    %v185 = vpop.f32.mrf.mxu0
    %v186 = vadd.f32 %v121, %v185
    %v187 = vpop.f32.mrf.mxu0
    %v188 = vpop.f32.mrf.mxu0
    %v189 = vadd.f32 %v121, %v188
    %v190 = vpop.f32.mrf.mxu0
    %191 = vdwg.mxu0
    %192 = vst.msk [vmem:[#allocation2] sm:$0xff] %vm52, %v186
    %193 = vst.msk [vmem:[#allocation2 + $0x8] sm:$0xff] %vm52, %v189
    // Predicated region
    $region22: #{tpu_custom_call.1} parent=1 // pred_check
      _
    $region23: #{tpu_custom_call.1} parent=1 // pred_check_branch
      %195 = sbr.rel (0) target = $region25
    $region24: #{tpu_custom_call.1} parent=1 // pred_region
      %s197 = ssub.s32 256, 256
      %198 = vsyncadd [#allocation3], %s197
      %s199 = sshll.u32 [#allocation2], 4
      %s200 = int_to_ptr.vmem [resolvable:$true] %s199
      %205 = dma.vmem_to_hbm [thread:$0]  %s200, 256, %s5, [#allocation3], 128, 128, 8
    $region25: #{tpu_custom_call.1} parent=1 // pred_fallthru
      _
    // Predicated region
    $region26: #{tpu_custom_call.1} parent=1 // pred_check
      _
    $region27: #{tpu_custom_call.1} parent=1 // pred_check_branch
      %207 = sbr.rel (0) target = $region29
    $region28: #{tpu_custom_call.1} parent=1 // pred_region
      %208 = dma.done [#allocation3], 256
    $region29: #{tpu_custom_call.1} parent=1 // pred_fallthru
      _
    %209 = vsyncpa [#allocation3], 1

</llo_original>
